<compile_context>
chip_gen: v7x
topology: tpu7x:2x2x1
jax: 0.10.0
libtpu: 0.0.40
codegen_flags: <defaults>
</compile_context>

<pallas_src>
import functools

import jax
import jax.numpy as jnp
from jax.experimental import pallas as pl
from jax.experimental.pallas import tpu as pltpu

_EPS = 1e-12            # F.normalize default eps
_EPS_SQ = _EPS * _EPS   # max(sqrt(ss), eps) == sqrt(max(ss, eps**2))


def _cosine_kernel(x_ref, w_ref, o_ref, *, scale):
    # x_ref: (TILE_B, IN) f32, w_ref: (IN, TILE_N) f32, o_ref: (TILE_B, TILE_N)
    x = x_ref[...]
    w = w_ref[...]

    # Row-wise L2 normalization of the inputs (full feature axis is in VMEM,
    # so per-sample statistics are exact regardless of batch tiling).
    x_ss = jnp.sum(x * x, axis=1, keepdims=True)
    x_n = x * jax.lax.rsqrt(jnp.maximum(x_ss, _EPS_SQ))

    # Column-wise L2 normalization of the weight tile (each column is one
    # out-feature's full in_features vector; columns are never split).
    w_ss = jnp.sum(w * w, axis=0, keepdims=True)
    w_n = w * jax.lax.rsqrt(jnp.maximum(w_ss, _EPS_SQ))

    # bf16 MXU inputs, f32 accumulation; elementwise/rsqrt math stays f32.
    acc = jnp.dot(
        x_n.astype(jnp.bfloat16),
        w_n.astype(jnp.bfloat16),
        preferred_element_type=jnp.float32,
    )
    o_ref[...] = (scale * acc).astype(o_ref.dtype)


def _round_up(n, m):
    return n + (-n) % m


def cosine_layer(x, weight_t, *, scale=10.0, tile_b=256, tile_n=256):
    """Forward of CosineLayer.

    x:        [B, in_features] float32
    weight_t: [in_features, out_features] float32 (transpose of PyTorch's
              (out_features, in_features) nn-layout, built at init time)
    returns:  [B, out_features] float32 = scale * cosine(x_row, weight_col)

    tile_b must be a multiple of 8, tile_n a multiple of 128. On v7x shrink
    tile_b (not tile_n) first if the 64 MiB VMEM budget gets tight.
    """
    assert tile_b % 8 == 0 and tile_n % 128 == 0
    B, IN = x.shape
    IN_w, OUT = weight_t.shape
    assert IN_w == IN, "weight_t must be (in_features, out_features)"

    # Lane/sublane-friendly zero padding (does not change norms or the dot).
    Bp = _round_up(B, 8)
    INp = _round_up(IN, 128)
    OUTp = _round_up(OUT, 128)
    if (Bp, INp) != (B, IN):
        x = jnp.pad(x, ((0, Bp - B), (0, INp - IN)))
    if (INp, OUTp) != (IN, OUT):
        weight_t = jnp.pad(weight_t, ((0, INp - IN), (0, OUTp - OUT)))

    tb = min(tile_b, Bp)
    tn = min(tile_n, OUTp)
    grid = (pl.cdiv(Bp, tb), pl.cdiv(OUTp, tn))

    # Double-buffered f32 input/output tiles + headroom.
    # TODO(synk): for very large in/out_features, store weight_t in bf16 to
    # halve weight DMA bytes and the resident footprint (esp. v7x, 64 MiB VMEM).
    resident = 2 * (tb * INp + INp * tn + tb * tn) * 4
    vmem_limit = int(min(96 * 2**20, max(2 * resident, 16 * 2**20)))

    out = pl.pallas_call(
        functools.partial(_cosine_kernel, scale=scale),
        out_shape=jax.ShapeDtypeStruct((Bp, OUTp), jnp.float32),
        grid_spec=pltpu.PrefetchScalarGridSpec(
            num_scalar_prefetch=0,
            grid=grid,
            in_specs=[
                pl.BlockSpec((tb, INp), lambda i, j: (i, 0)),   # x batch tile
                pl.BlockSpec((INp, tn), lambda i, j: (0, j)),   # weight col tile
            ],
            out_specs=pl.BlockSpec((tb, tn), lambda i, j: (i, j)),
        ),
        compiler_params=pltpu.CompilerParams(
            dimension_semantics=("parallel", "parallel"),
            vmem_limit_bytes=vmem_limit,
        ),
    )(x, weight_t)

    if (Bp, OUTp) != (B, OUT):
        out = out[:B, :OUT]
    return out


def cosine_layer_ref(x, weight_t, scale=10.0):
    """Pure-JAX reference (matches F.linear(F.normalize(x), F.normalize(W)))."""
    xn = x / jnp.maximum(jnp.sqrt(jnp.sum(x * x, axis=1, keepdims=True)), _EPS)
    wn = weight_t / jnp.maximum(
        jnp.sqrt(jnp.sum(weight_t * weight_t, axis=0, keepdims=True)), _EPS)
    return scale * (xn @ wn)


if __name__ == "__main__":
    key = jax.random.PRNGKey(0)
    k_x, k_w = jax.random.split(key)

    # Small, lane-aligned shapes consistent with CosineLayer (default 2048->128).
    B, in_features, out_features = 64, 256, 256
    x = jax.random.normal(k_x, (B, in_features), jnp.float32)
    # PyTorch init: torch.nn.init.uniform_ on weight (out, in); stored transposed.
    weight_t = jax.random.uniform(k_w, (in_features, out_features), jnp.float32)

    # tile_b=32, tile_n=128 -> grid (2, 2): exercises both grid axes.
    out = cosine_layer(x, weight_t, tile_b=32, tile_n=128)
    out = jax.block_until_ready(out)

    ref = cosine_layer_ref(x, weight_t)
    assert out.shape == (B, out_features)
    max_err = jnp.max(jnp.abs(out - ref))
    assert jnp.allclose(out, ref, atol=0.1, rtol=0.0), (
        f"mismatch vs reference: max abs err = {max_err}")

    print("KERNEL_OK")
</pallas_src>

<mosaic_0001>
module attributes {stable_mosaic.version = 11 : i64} {
  func.func @_cosine_kernel(%arg0: i32, %arg1: i32, %arg2: memref<32x256xf32, #tpu.memory_space<vmem>>, %arg3: memref<256x128xf32, #tpu.memory_space<vmem>>, %arg4: memref<32x128xf32, #tpu.memory_space<vmem>>) attributes {dimension_semantics = [#tpu.dimension_semantics<parallel>, #tpu.dimension_semantics<parallel>], iteration_bounds = array<i64: 2, 2>, scalar_prefetch = 0 : i64, scratch_operands = 0 : i64, tpu.core_type = #tpu.core_type<tc>, window_params = [{transform_indices = @transform_0, window_bounds = array<i64: 32, 256>}, {transform_indices = @transform_1, window_bounds = array<i64: 256, 128>}, {transform_indices = @transform_2, window_bounds = array<i64: 32, 128>}]} {
    %c0 = arith.constant 0 : index
    %c0_0 = arith.constant 0 : index
    %0 = vector.load %arg2[%c0, %c0_0] : memref<32x256xf32, #tpu.memory_space<vmem>>, vector<32x256xf32>
    %c0_1 = arith.constant 0 : index
    %c0_2 = arith.constant 0 : index
    %1 = vector.load %arg3[%c0_1, %c0_2] : memref<256x128xf32, #tpu.memory_space<vmem>>, vector<256x128xf32>
    %2 = arith.mulf %0, %0 : vector<32x256xf32>
    %cst = arith.constant dense<0.000000e+00> : vector<32xf32>
    %3 = vector.multi_reduction <add>, %2, %cst [1] : vector<32x256xf32> to vector<32xf32>
    %4 = vector.shape_cast %3 : vector<32xf32> to vector<32x1xf32>
    %cst_3 = arith.constant 1.000000e-24 : f32
    %5 = vector.broadcast %cst_3 : f32 to vector<32x1xf32>
    %6 = arith.maximumf %4, %5 : vector<32x1xf32>
    %7 = math.rsqrt %6 : vector<32x1xf32>
    %8 = vector.broadcast %7 : vector<32x1xf32> to vector<32x256xf32>
    %9 = arith.mulf %0, %8 : vector<32x256xf32>
    %10 = arith.mulf %1, %1 : vector<256x128xf32>
    %cst_4 = arith.constant dense<0.000000e+00> : vector<128xf32>
    %11 = vector.multi_reduction <add>, %10, %cst_4 [0] : vector<256x128xf32> to vector<128xf32>
    %12 = vector.shape_cast %11 : vector<128xf32> to vector<1x128xf32>
    %cst_5 = arith.constant 1.000000e-24 : f32
    %13 = vector.broadcast %cst_5 : f32 to vector<1x128xf32>
    %14 = arith.maximumf %12, %13 : vector<1x128xf32>
    %15 = math.rsqrt %14 : vector<1x128xf32>
    %16 = vector.broadcast %15 : vector<1x128xf32> to vector<256x128xf32>
    %17 = arith.mulf %1, %16 : vector<256x128xf32>
    %18 = arith.truncf %9 : vector<32x256xf32> to vector<32x256xbf16>
    %19 = arith.truncf %17 : vector<256x128xf32> to vector<256x128xbf16>
    %cst_6 = arith.constant dense<0.000000e+00> : vector<32x128xf32>
    %20 = tpu.matmul %18, %19, %cst_6 {dimension_numbers = #tpu.dot_dimension_numbers<[1], [0], [0], [1], [0, 0, 1, 1], [], []>} : vector<32x256xbf16>, vector<256x128xbf16>, vector<32x128xf32> -> vector<32x128xf32>
    %cst_7 = arith.constant 1.000000e+01 : f32
    %21 = vector.broadcast %cst_7 : f32 to vector<32x128xf32>
    %22 = arith.mulf %21, %20 : vector<32x128xf32>
    %c0_8 = arith.constant 0 : index
    %c0_9 = arith.constant 0 : index
    %23 = vector.load %arg4[%c0_8, %c0_9] : memref<32x128xf32, #tpu.memory_space<vmem>>, vector<32x128xf32>
    tpu.vector_store %arg4[%c0_8, %c0_9], %22 {strides = array<i32>} : memref<32x128xf32, #tpu.memory_space<vmem>>, vector<32x128xf32>,
    return
  }
  func.func @transform_0(%arg0: i32, %arg1: i32) -> (i32, i32) {
    %c0_i32 = arith.constant 0 : i32
    %c0_i32_0 = arith.constant 0 : i32
    return %arg0, %c0_i32 : i32, i32
  }
  func.func @transform_1(%arg0: i32, %arg1: i32) -> (i32, i32) {
    %c0_i32 = arith.constant 0 : i32
    %c0_i32_0 = arith.constant 0 : i32
    return %c0_i32, %arg1 : i32, i32
  }
  func.func @transform_2(%arg0: i32, %arg1: i32) -> (i32, i32) {
    %c0_i32 = arith.constant 0 : i32
    return %arg0, %arg1 : i32, i32
  }
}

</mosaic_0001>

<llo_original>
// kernel: tpu_custom_call.1
$region0: #{tpu_custom_call.1}
  #allocation0 [shape = 'u32[]', space=smem, size = 0x4, offset = 0x4, fixed_abs, tag = 'smem constant byte address 0x4 - core index']
  #allocation1 [shape = 'u32[144,128]{1,0:T(1,128)}', space=vmem, size = 0x12000, scoped, tag = 'internal scratch']
  %s0 = inlined_call_operand.hbm [shape: f32[64,256], index: 0, kind: input, shape index: {}]
  %s1 = inlined_call_operand.hbm [shape: f32[256,256], index: 1, kind: input, shape index: {}]
  %s2 = inlined_call_operand.hbm [shape: f32[64,256], index: 2, kind: output, shape index: {}]
  %s3 = sld [smem:[#allocation0]]
  $region49: #{tpu_custom_call.1} parent=0
    _
  %s5 = ssub.s32 1, %s3
  %s6 = scalar_select 0, %s5, %s3
  $region1: #{tpu_custom_call.1} parent=0
    #allocation2 [shape = 'u8[65536]{0}', space=vmem, size = 0x10000, scoped, tag = 'input window, operand 0']
    #allocation3 [shape = 's32[2]{0}', space=sflag, size = 0x8, scoped, tag = 'scoped memory for tpu_custom_call.1']
    #allocation4 [shape = 's32[2]{0}', space=sflag, size = 0x8, scoped, tag = 'scoped memory for tpu_custom_call.1']
    #allocation5 [shape = 'u8[262144]{0}', space=vmem, size = 0x40000, scoped, tag = 'input window, operand 1']
    #allocation6 [shape = 's32[2]{0}', space=sflag, size = 0x8, scoped, tag = 'scoped memory for tpu_custom_call.1']
    #allocation7 [shape = 'u8[32768]{0}', space=vmem, size = 0x8000, scoped, tag = 'output window, operand 0']
    %7 = vsyncpa [#allocation3], 0
    %s8 = scalar_lea.sflag [#allocation3], 1
    %9 = vsyncpa %s8, 0
    %10 = vsyncpa [#allocation6], 0
    %s11 = scalar_lea.sflag [#allocation6], 1
    %12 = vsyncpa %s11, 0
    %13 = vsyncpa [#allocation4], 0
    %s14 = scalar_lea.sflag [#allocation4], 1
    %15 = vsyncpa %s14, 0
    loop: start=0, step=1, limit=6
    $region2: #{tpu_custom_call.1} parent=1 // loop_pre_header
      _
    $region3: #{tpu_custom_call.1} parent=1 // loop_header
      %s17 = sphi 0, %s21
      %p18 = scmp.ge.s32.totalorder %s17, 6
      %s24 = sphi 0, %s36
      %s25 = sphi 0, %s32
      %s26 = sphi 0, %s24
      %s27 = sphi 0, %s25
      %s28 = sphi 0, %s26
      %s29 = sphi 0, %s27
      %s39 = sphi 0, %s41
      %s42 = sphi 0, %s39
      %s43 = sphi 0, %s42
      %s59 = sphi 0, %s43
      %s65 = sphi 0, %s67
      %s68 = sphi 0, %s65
      %s69 = sphi 0, %s68
      %s85 = sphi 0, %s69
      %s93 = sphi 0, %s95
      %s96 = sphi 0, %s93
      %s97 = sphi 0, %s96
      %s113 = sphi 0, %s97
    $region4: #{tpu_custom_call.1} parent=1 // loop_header_branch
      %20 = sbr.rel (%p18) target = $region8
    $region5: #{tpu_custom_call.1} parent=1 // loop_body
      %s22 = ssub.s32 %s17, 1
      %s23 = ssub.s32 %s17, 2
      %s30 = sadd.s32 1, %s25
      %p31 = scmp.ge.s32.totalorder %s30, 2
      %s32 = scalar_select %p31, 0, %s30
      %s33 = sadd.s32 1, %s24
      %s34 = scalar_select %p31, %s33, %s24
      %p35 = scmp.ge.s32.totalorder %s34, 2
      %s36 = scalar_select %p35, 0, %s34
      %s37 = ssub.s32 %s24, %s36
      %p38 = scmp.eq.s32.totalorder %s37, 0
      %s40 = sadd.s32 %s39, 1
      %s41 = scalar_select %p38, %s39, %s40
      %p44 = pneg %p38
      %p45 = scmp.eq.s32.totalorder %s17, 3
      %p46 = por %p44, %p45
      %p47 = scmp.ne.s32.totalorder %s39, %s42
      %p48 = scmp.eq.s32.totalorder %s17, 0
      %p49 = por %p47, %p48
      %p50 = scmp.ne.s32.totalorder %s39, %s42
      %p51 = scmp.eq.s32.totalorder %s22, 3
      %p52 = por %p50, %p51
      %p53 = scmp.ne.s32.totalorder %s42, %s43
      %p54 = scmp.eq.s32.totalorder %s22, 0
      %p55 = por %p53, %p54
      %p56 = scmp.ne.s32.totalorder %s42, %s43
      %p57 = scmp.eq.s32.totalorder %s23, 3
      %p58 = por %p56, %p57
      %p60 = scmp.ne.s32.totalorder %s43, %s59
      %p61 = scmp.eq.s32.totalorder %s23, 0
      %p62 = por %p60, %p61
      %s63 = ssub.s32 %s25, %s32
      %p64 = scmp.eq.s32.totalorder %s63, 0
      %s66 = sadd.s32 %s65, 1
      %s67 = scalar_select %p64, %s65, %s66
      %p70 = pneg %p64
      %p71 = scmp.eq.s32.totalorder %s17, 3
      %p72 = por %p70, %p71
      %p73 = scmp.ne.s32.totalorder %s65, %s68
      %p74 = scmp.eq.s32.totalorder %s17, 0
      %p75 = por %p73, %p74
      %p76 = scmp.ne.s32.totalorder %s65, %s68
      %p77 = scmp.eq.s32.totalorder %s22, 3
      %p78 = por %p76, %p77
      %p79 = scmp.ne.s32.totalorder %s68, %s69
      %p80 = scmp.eq.s32.totalorder %s22, 0
      %p81 = por %p79, %p80
      %p82 = scmp.ne.s32.totalorder %s68, %s69
      %p83 = scmp.eq.s32.totalorder %s23, 3
      %p84 = por %p82, %p83
      %p86 = scmp.ne.s32.totalorder %s69, %s85
      %p87 = scmp.eq.s32.totalorder %s23, 0
      %p88 = por %p86, %p87
      %s89 = ssub.s32 %s24, %s36
      %s90 = ssub.s32 %s25, %s32
      %s91 = sor.u32 %s89, %s90
      %p92 = scmp.eq.s32.totalorder %s91, 0
      %s94 = sadd.s32 %s93, 1
      %s95 = scalar_select %p92, %s93, %s94
      %p98 = pneg %p92
      %p99 = scmp.eq.s32.totalorder %s17, 3
      %p100 = por %p98, %p99
      %p101 = scmp.ne.s32.totalorder %s93, %s96
      %p102 = scmp.eq.s32.totalorder %s17, 0
      %p103 = por %p101, %p102
      %p104 = scmp.ne.s32.totalorder %s93, %s96
      %p105 = scmp.eq.s32.totalorder %s22, 3
      %p106 = por %p104, %p105
      %p107 = scmp.ne.s32.totalorder %s96, %s97
      %p108 = scmp.eq.s32.totalorder %s22, 0
      %p109 = por %p107, %p108
      %p110 = scmp.ne.s32.totalorder %s96, %s97
      %p111 = scmp.eq.s32.totalorder %s23, 3
      %p112 = por %p110, %p111
      %p114 = scmp.ne.s32.totalorder %s97, %s113
      %p115 = scmp.eq.s32.totalorder %s23, 0
      %p116 = por %p114, %p115
      %p117 = scmp.le.s32.totalorder 1, %s17
      %p118 = scmp.lt.s32.totalorder %s17, 5
      %p119 = pnand %p117, %p118
      %p120 = pneg %p119
      // Predicated region
      $region9: #{tpu_custom_call.1} parent=5 // pred_check
        _
      $region10: #{tpu_custom_call.1} parent=5 // pred_check_branch
        %122 = sbr.rel (%p119) target = $region12
      $region11: #{tpu_custom_call.1} parent=5 // pred_region
        %s123 = ssub.s32 %s17, 1
      $region12: #{tpu_custom_call.1} parent=5 // pred_fallthru
        _
      %p124 = scmp.lt.s32.totalorder %s17, 4
      // Predicated region
      $region13: #{tpu_custom_call.1} parent=5 // pred_check
        %p125 = pneg %p124
      $region14: #{tpu_custom_call.1} parent=5 // pred_check_branch
        %127 = sbr.rel (%p125) target = $region16
      $region15: #{tpu_custom_call.1} parent=5 // pred_region
        // Predicated region
        $region17: #{tpu_custom_call.1} parent=15 // pred_check
          %p128 = pneg %p49
        $region18: #{tpu_custom_call.1} parent=15 // pred_check_branch
          %130 = sbr.rel (%p128) target = $region20
        $region19: #{tpu_custom_call.1} parent=15 // pred_region
          %s131 = sand.u32 %s39, 1
          %s132 = scalar_lea.sflag [#allocation3], %s131
          %s133 = sand.u32 %s39, 1
          %s134 = smul.addr %s133, 64
          %s135 = scalar_lea.vmem [#allocation2], %s134
          %s136 = smul.u32 4, %s24
          %s138 = ssub.s32 1024, 1024
          %139 = vsyncadd %s132, %s138
          %s140 = smul.addr %s136, 2
          %s141 = smul.addr %s140, 128
          %s142 = scalar_lea.hbm %s0, %s141
          %s143 = sshll.u32 %s135, 4
          %s144 = int_to_ptr.vmem [resolvable:$true] %s143
          %149 = dma.hbm_to_vmem [thread:$0]  %s142, 1024, %s144, %s132, 256, 256, 16
        $region20: #{tpu_custom_call.1} parent=15 // pred_fallthru
          _
        // Predicated region
        $region21: #{tpu_custom_call.1} parent=15 // pred_check
          %p150 = pneg %p75
        $region22: #{tpu_custom_call.1} parent=15 // pred_check_branch
          %152 = sbr.rel (%p150) target = $region24
        $region23: #{tpu_custom_call.1} parent=15 // pred_region
          %s153 = sand.u32 %s65, 1
          %s154 = scalar_lea.sflag [#allocation6], %s153
          %s155 = sand.u32 %s65, 1
          %s156 = smul.addr %s155, 256
          %s157 = scalar_lea.vmem [#allocation5], %s156
          %s159 = ssub.s32 4096, 4096
          %160 = vsyncadd %s154, %s159
          %s161 = smul.addr %s25, 128
          %s162 = scalar_lea.hbm %s1, %s161
          %s163 = sshll.u32 %s157, 4
          %s164 = int_to_ptr.vmem [resolvable:$true] %s163
          %169 = dma.hbm_to_vmem [thread:$0]  %s162, 4096, %s164, %s154, 256, 128, 8
        $region24: #{tpu_custom_call.1} parent=15 // pred_fallthru
          _
      $region16: #{tpu_custom_call.1} parent=5 // pred_fallthru
        _
      %p170 = scmp.le.s32.totalorder 1, %s17
      %p171 = scmp.lt.s32.totalorder %s17, 5
      %p172 = pnand %p170, %p171
      %p173 = pneg %p172
      // Predicated region
      $region25: #{tpu_custom_call.1} parent=5 // pred_check
        _
      $region26: #{tpu_custom_call.1} parent=5 // pred_check_branch
        %175 = sbr.rel (%p172) target = $region28
      $region27: #{tpu_custom_call.1} parent=5 // pred_region
        %s176 = ssub.s32 %s17, 1
        %s177 = sand.u32 %s42, 1
        %s178 = scalar_lea.sflag [#allocation3], %s177
        %s179 = sand.u32 %s42, 1
        %s180 = smul.addr %s179, 64
        %s181 = scalar_lea.vmem [#allocation2], %s180
        // Predicated region
        $region29: #{tpu_custom_call.1} parent=27 // pred_check
          %p182 = pneg %p55
        $region30: #{tpu_custom_call.1} parent=27 // pred_check_branch
          %184 = sbr.rel (%p182) target = $region32
        $region31: #{tpu_custom_call.1} parent=27 // pred_region
          %185 = dma.done %s178, 1024
        $region32: #{tpu_custom_call.1} parent=27 // pred_fallthru
          _
        %s186 = sand.u32 %s68, 1
        %s187 = scalar_lea.sflag [#allocation6], %s186
        %s188 = sand.u32 %s68, 1
        %s189 = smul.addr %s188, 256
        %s190 = scalar_lea.vmem [#allocation5], %s189
        // Predicated region
        $region33: #{tpu_custom_call.1} parent=27 // pred_check
          %p191 = pneg %p81
        $region34: #{tpu_custom_call.1} parent=27 // pred_check_branch
          %193 = sbr.rel (%p191) target = $region36
        $region35: #{tpu_custom_call.1} parent=27 // pred_region
          %194 = dma.done %s187, 4096
        $region36: #{tpu_custom_call.1} parent=27 // pred_fallthru
          _
        %s195 = sand.u32 %s42, 1
        %s196 = scalar_lea.sflag [#allocation3], %s195
        %s197 = sand.u32 %s42, 1
        %s198 = smul.addr %s197, 64
        %s199 = scalar_lea.vmem [#allocation2], %s198
        %p200 = pneg %p55
        %p201 = pneg %p52
        %s202 = sand.u32 %s68, 1
        %s203 = scalar_lea.sflag [#allocation6], %s202
        %s204 = sand.u32 %s68, 1
        %s205 = smul.addr %s204, 256
        %s206 = scalar_lea.vmem [#allocation5], %s205
        %p207 = pneg %p81
        %p208 = pneg %p78
        %p209 = pneg %p109
        %p210 = pneg %p106
        %s211 = sand.u32 %s96, 1
        %s212 = scalar_lea.sflag [#allocation4], %s211
        %s213 = sand.u32 %s96, 1
        %s214 = smul.addr %s213, 32
        %s215 = scalar_lea.vmem [#allocation7], %s214
        %s216 = smul.u32 4, %s26
        %s217 = smul.u32 4, %s26
        %v219 = vld [vmem:[%s181] sm:$0xff]
        %v220 = vld [vmem:[%s181 + $0x8] sm:$0xff]
        %v221 = vld [vmem:[%s181 + $0x10] sm:$0xff]
        %v222 = vld [vmem:[%s181 + $0x18] sm:$0xff]
        %v223 = vld [vmem:[%s181 + $0x20] sm:$0xff]
        %v224 = vld [vmem:[%s181 + $0x28] sm:$0xff]
        %v225 = vld [vmem:[%s181 + $0x30] sm:$0xff]
        %v226 = vld [vmem:[%s181 + $0x38] sm:$0xff]
        %v227 = vld [vmem:[%s190] sm:$0xff]
        %v228 = vld [vmem:[%s190 + $0x8] sm:$0xff]
        %v229 = vld [vmem:[%s190 + $0x10] sm:$0xff]
        %v230 = vld [vmem:[%s190 + $0x18] sm:$0xff]
        %v231 = vld [vmem:[%s190 + $0x20] sm:$0xff]
        %v232 = vld [vmem:[%s190 + $0x28] sm:$0xff]
        %v233 = vld [vmem:[%s190 + $0x30] sm:$0xff]
        %v234 = vld [vmem:[%s190 + $0x38] sm:$0xff]
        %v235 = vld [vmem:[%s190 + $0x40] sm:$0xff]
        %v236 = vld [vmem:[%s190 + $0x48] sm:$0xff]
        %v237 = vld [vmem:[%s190 + $0x50] sm:$0xff]
        %v238 = vld [vmem:[%s190 + $0x58] sm:$0xff]
        %v239 = vld [vmem:[%s190 + $0x60] sm:$0xff]
        %v240 = vld [vmem:[%s190 + $0x68] sm:$0xff]
        %v241 = vld [vmem:[%s190 + $0x70] sm:$0xff]
        %v242 = vld [vmem:[%s190 + $0x78] sm:$0xff]
        %v243 = vld [vmem:[%s190 + $0x80] sm:$0xff]
        %v244 = vld [vmem:[%s190 + $0x88] sm:$0xff]
        %v245 = vld [vmem:[%s190 + $0x90] sm:$0xff]
        %v246 = vld [vmem:[%s190 + $0x98] sm:$0xff]
        %v247 = vld [vmem:[%s190 + $0xa0] sm:$0xff]
        %v248 = vld [vmem:[%s190 + $0xa8] sm:$0xff]
        %v249 = vld [vmem:[%s190 + $0xb0] sm:$0xff]
        %v250 = vld [vmem:[%s190 + $0xb8] sm:$0xff]
        %v251 = vld [vmem:[%s190 + $0xc0] sm:$0xff]
        %v252 = vld [vmem:[%s190 + $0xc8] sm:$0xff]
        %v253 = vld [vmem:[%s190 + $0xd0] sm:$0xff]
        %v254 = vld [vmem:[%s190 + $0xd8] sm:$0xff]
        %v255 = vld [vmem:[%s190 + $0xe0] sm:$0xff]
        %v256 = vld [vmem:[%s190 + $0xe8] sm:$0xff]
        %v257 = vld [vmem:[%s190 + $0xf0] sm:$0xff]
        %v258 = vld [vmem:[%s190 + $0xf8] sm:$0xff]
        %v259 = vmul.f32 %v219, %v219
        %v260 = vmul.f32 %v220, %v220
        %v261 = vmul.f32 %v221, %v221
        %v262 = vmul.f32 %v222, %v222
        %v263 = vmul.f32 %v223, %v223
        %v264 = vmul.f32 %v224, %v224
        %v265 = vmul.f32 %v225, %v225
        %v266 = vmul.f32 %v226, %v226
        %v267 = vadd.f32 %v259, %v260
        %268 = vadd.xlane.f32.xlu0 %v267
        %v269 = vpop.xlane.xlu0 %268
        %v270 = vadd.f32 %v261, %v262
        %271 = vadd.xlane.f32.xlu0 %v270
        %v272 = vpop.xlane.xlu0 %271
        %v273 = vadd.f32 %v263, %v264
        %274 = vadd.xlane.f32.xlu0 %v273
        %v275 = vpop.xlane.xlu0 %274
        %v276 = vadd.f32 %v265, %v266
        %277 = vadd.xlane.f32.xlu0 %v276
        %v278 = vpop.xlane.xlu0 %277
        %v279 = vmax.f32 %v269, 1e-24
        %v280 = vmax.f32 %v272, 1e-24
        %v281 = vmax.f32 %v275, 1e-24
        %v282 = vmax.f32 %v278, 1e-24
        %v283 = vrsqrt.pop %v279
        %v284 = vrsqrt.pop %v280
        %v285 = vrsqrt.pop %v281
        %v286 = vrsqrt.pop %v282
        %v287 = vmul.f32 %v219, %v283
        %v288 = vmul.f32 %v220, %v283
        %v289 = vmul.f32 %v221, %v284
        %v290 = vmul.f32 %v222, %v284
        %v291 = vmul.f32 %v223, %v285
        %v292 = vmul.f32 %v224, %v285
        %v293 = vmul.f32 %v225, %v286
        %v294 = vmul.f32 %v226, %v286
        %v295 = vmul.f32 %v227, %v227
        %v296 = vmul.f32 %v228, %v228
        %v297 = vmul.f32 %v229, %v229
        %v298 = vmul.f32 %v230, %v230
        %v299 = vmul.f32 %v231, %v231
        %v300 = vmul.f32 %v232, %v232
        %v301 = vmul.f32 %v233, %v233
        %v302 = vmul.f32 %v234, %v234
        %v303 = vmul.f32 %v235, %v235
        %v304 = vmul.f32 %v236, %v236
        %v305 = vmul.f32 %v237, %v237
        %v306 = vmul.f32 %v238, %v238
        %v307 = vmul.f32 %v239, %v239
        %v308 = vmul.f32 %v240, %v240
        %v309 = vmul.f32 %v241, %v241
        %v310 = vmul.f32 %v242, %v242
        %v311 = vmul.f32 %v243, %v243
        %v312 = vmul.f32 %v244, %v244
        %v313 = vmul.f32 %v245, %v245
        %v314 = vmul.f32 %v246, %v246
        %v315 = vmul.f32 %v247, %v247
        %v316 = vmul.f32 %v248, %v248
        %v317 = vmul.f32 %v249, %v249
        %v318 = vmul.f32 %v250, %v250
        %v319 = vmul.f32 %v251, %v251
        %v320 = vmul.f32 %v252, %v252
        %v321 = vmul.f32 %v253, %v253
        %v322 = vmul.f32 %v254, %v254
        %v323 = vmul.f32 %v255, %v255
        %v324 = vmul.f32 %v256, %v256
        %v325 = vmul.f32 %v257, %v257
        %v326 = vmul.f32 %v258, %v258
        %v327 = vadd.f32 %v295, %v296
        %v328 = vadd.f32 %v327, %v297
        %v329 = vadd.f32 %v328, %v298
        %v330 = vadd.f32 %v329, %v299
        %v331 = vadd.f32 %v330, %v300
        %v332 = vadd.f32 %v331, %v301
        %v333 = vadd.f32 %v332, %v302
        %v334 = vadd.f32 %v333, %v303
        %v335 = vadd.f32 %v334, %v304
        %v336 = vadd.f32 %v335, %v305
        %v337 = vadd.f32 %v336, %v306
        %v338 = vadd.f32 %v337, %v307
        %v339 = vadd.f32 %v338, %v308
        %v340 = vadd.f32 %v339, %v309
        %v341 = vadd.f32 %v340, %v310
        %v342 = vadd.f32 %v341, %v311
        %v343 = vadd.f32 %v342, %v312
        %v344 = vadd.f32 %v343, %v313
        %v345 = vadd.f32 %v344, %v314
        %v346 = vadd.f32 %v345, %v315
        %v347 = vadd.f32 %v346, %v316
        %v348 = vadd.f32 %v347, %v317
        %v349 = vadd.f32 %v348, %v318
        %v350 = vadd.f32 %v349, %v319
        %v351 = vadd.f32 %v350, %v320
        %v352 = vadd.f32 %v351, %v321
        %v353 = vadd.f32 %v352, %v322
        %v354 = vadd.f32 %v353, %v323
        %v355 = vadd.f32 %v354, %v324
        %v356 = vadd.f32 %v355, %v325
        %v357 = vadd.f32 %v356, %v326
        %v358 = vrot.slane %v357, 4
        %v359 = vadd.f32 %v357, %v358
        %v360 = vrot.slane %v359, 2
        %v361 = vadd.f32 %v359, %v360
        %v362 = vrot.slane %v361, 1
        %v363 = vadd.f32 %v361, %v362
        %v364 = vmax.f32 %v363, 1e-24
        %v365 = vrsqrt.pop %v364
        %v366 = vmul.f32 %v227, %v365
        %v367 = vmul.f32 %v228, %v365
        %v368 = vmul.f32 %v229, %v365
        %v369 = vmul.f32 %v230, %v365
        %v370 = vmul.f32 %v231, %v365
        %v371 = vmul.f32 %v232, %v365
        %v372 = vmul.f32 %v233, %v365
        %v373 = vmul.f32 %v234, %v365
        %v374 = vmul.f32 %v235, %v365
        %v375 = vmul.f32 %v236, %v365
        %v376 = vmul.f32 %v237, %v365
        %v377 = vmul.f32 %v238, %v365
        %v378 = vmul.f32 %v239, %v365
        %v379 = vmul.f32 %v240, %v365
        %v380 = vmul.f32 %v241, %v365
        %v381 = vmul.f32 %v242, %v365
        %v382 = vmul.f32 %v243, %v365
        %v383 = vmul.f32 %v244, %v365
        %v384 = vmul.f32 %v245, %v365
        %v385 = vmul.f32 %v246, %v365
        %v386 = vmul.f32 %v247, %v365
        %v387 = vmul.f32 %v248, %v365
        %v388 = vmul.f32 %v249, %v365
        %v389 = vmul.f32 %v250, %v365
        %v390 = vmul.f32 %v251, %v365
        %v391 = vmul.f32 %v252, %v365
        %v392 = vmul.f32 %v253, %v365
        %v393 = vmul.f32 %v254, %v365
        %v394 = vmul.f32 %v255, %v365
        %v395 = vmul.f32 %v256, %v365
        %v396 = vmul.f32 %v257, %v365
        %v397 = vmul.f32 %v258, %v365
        %v398 = vpack.c.bf16 %v289, %v287
        %v399 = vpack.c.bf16 %v290, %v288
        %v400 = vpack.c.bf16 %v293, %v291
        %v401 = vpack.c.bf16 %v294, %v292
        %v402 = vpack.c.bf16 %v367, %v366
        %v403 = vpack.c.bf16 %v369, %v368
        %v404 = vpack.c.bf16 %v371, %v370
        %v405 = vpack.c.bf16 %v373, %v372
        %v406 = vpack.c.bf16 %v375, %v374
        %v407 = vpack.c.bf16 %v377, %v376
        %v408 = vpack.c.bf16 %v379, %v378
        %v409 = vpack.c.bf16 %v381, %v380
        %v410 = vpack.c.bf16 %v383, %v382
        %v411 = vpack.c.bf16 %v385, %v384
        %v412 = vpack.c.bf16 %v387, %v386
        %v413 = vpack.c.bf16 %v389, %v388
        %v414 = vpack.c.bf16 %v391, %v390
        %v415 = vpack.c.bf16 %v393, %v392
        %v416 = vpack.c.bf16 %v395, %v394
        %v417 = vpack.c.bf16 %v397, %v396
        %418 = vmatprep.subr.bf16.mxu0 0
        %419 = vmatpush1.bf16.msra.mxu0 %v402
        %420 = vmatprep.subr.bf16.mxu0 0
        %421 = vmatpush1.bf16.msra.mxu0 %v403
        %422 = vmatprep.subr.bf16.mxu0 0
        %423 = vmatpush1.bf16.msra.mxu0 %v404
        %424 = vmatprep.subr.bf16.mxu0 0
        %425 = vmatpush1.bf16.msra.mxu0 %v405
        %426 = vmatprep.subr.bf16.mxu0 0
        %427 = vmatpush1.bf16.msra.mxu0 %v406
        %428 = vmatprep.subr.bf16.mxu0 0
        %429 = vmatpush1.bf16.msra.mxu0 %v407
        %430 = vmatprep.subr.bf16.mxu0 0
        %431 = vmatpush1.bf16.msra.mxu0 %v408
        %432 = vmatprep.subr.bf16.mxu0 0
        %433 = vmatpush1.bf16.msra.mxu0 %v409
        %434 = vmatprep.subr.bf16.mxu0 0
        %435 = vmatpush1.bf16.msra.mxu0 %v410
        %436 = vmatprep.subr.bf16.mxu0 0
        %437 = vmatpush1.bf16.msra.mxu0 %v411
        %438 = vmatprep.subr.bf16.mxu0 0
        %439 = vmatpush1.bf16.msra.mxu0 %v412
        %440 = vmatprep.subr.bf16.mxu0 0
        %441 = vmatpush1.bf16.msra.mxu0 %v413
        %442 = vmatprep.subr.bf16.mxu0 0
        %443 = vmatpush1.bf16.msra.mxu0 %v414
        %444 = vmatprep.subr.bf16.mxu0 0
        %445 = vmatpush1.bf16.msra.mxu0 %v415
        %446 = vmatprep.subr.bf16.mxu0 0
        %447 = vmatpush1.bf16.msra.mxu0 %v416
        %448 = vmatprep.subr.bf16.mxu0 0
        %449 = vmatpush1.bf16.msra.mxu0 %v417
        %450 = vmatprep.mubr.bf16.mxu0 %v399
        %451 = vmatmul.mubr.bf16.gmra.mrb[0].mxu0 %v398
        %v452 = vpop.f32.mrb[0].mxu0
        %v453 = vadd.f32 0.0, %v452
        %v454 = vpop.f32.mrb[0].mxu0
        %v455 = vpop.f32.mrb[0].mxu0
        %v456 = vadd.f32 0.0, %v455
        %v457 = vpop.f32.mrb[0].mxu0
        %458 = vmatprep.mubr.bf16.mxu0 %v401
        %459 = vmatmul.mubr.bf16.gmra.mrb[0].mxu0 %v400
        %v460 = vpop.f32.mrb[0].mxu0
        %v461 = vadd.f32 0.0, %v460
        %v462 = vpop.f32.mrb[0].mxu0
        %v463 = vpop.f32.mrb[0].mxu0
        %v464 = vadd.f32 0.0, %v463
        %v465 = vpop.f32.mrb[0].mxu0
        %466 = vdwg.mxu0
        %v467 = vmul.f32 %v453, 10.0
        %v468 = vmul.f32 %v456, 10.0
        %v469 = vmul.f32 %v461, 10.0
        %v470 = vmul.f32 %v464, 10.0
        %471 = vst [vmem:[%s215] sm:$0xff] %v467
        %472 = vst [vmem:[%s215 + $0x8] sm:$0xff] %v468
        %473 = vst [vmem:[%s215 + $0x10] sm:$0xff] %v469
        %474 = vst [vmem:[%s215 + $0x18] sm:$0xff] %v470
        %s475 = sand.u32 %s96, 1
        %s476 = scalar_lea.sflag [#allocation4], %s475
        %s477 = sand.u32 %s96, 1
        %s478 = smul.addr %s477, 32
        %s479 = scalar_lea.vmem [#allocation7], %s478
        // Predicated region
        $region37: #{tpu_custom_call.1} parent=27 // pred_check
          %p480 = pneg %p106
        $region38: #{tpu_custom_call.1} parent=27 // pred_check_branch
          %482 = sbr.rel (%p480) target = $region40
        $region39: #{tpu_custom_call.1} parent=27 // pred_region
          %s483 = smul.u32 4, %s26
          %s485 = ssub.s32 512, 512
          %486 = vsyncadd %s476, %s485
          %s487 = smul.addr %s483, 2
          %s488 = sadd.s32 %s27, %s487
          %s489 = smul.addr %s488, 128
          %s490 = scalar_lea.hbm %s2, %s489
          %s491 = sshll.u32 %s479, 4
          %s492 = int_to_ptr.vmem [resolvable:$true] %s491
          %497 = dma.vmem_to_hbm [thread:$0]  %s492, 512, %s490, %s476, 128, 256, 8
        $region40: #{tpu_custom_call.1} parent=27 // pred_fallthru
          _
      $region28: #{tpu_custom_call.1} parent=5 // pred_fallthru
        _
      %p498 = scmp.le.s32.totalorder 2, %s17
      // Predicated region
      $region41: #{tpu_custom_call.1} parent=5 // pred_check
        %p499 = pneg %p498
      $region42: #{tpu_custom_call.1} parent=5 // pred_check_branch
        %501 = sbr.rel (%p499) target = $region44
      $region43: #{tpu_custom_call.1} parent=5 // pred_region
        %s502 = ssub.s32 %s17, 2
        // Predicated region
        $region45: #{tpu_custom_call.1} parent=43 // pred_check
          %p503 = pneg %p112
        $region46: #{tpu_custom_call.1} parent=43 // pred_check_branch
          %505 = sbr.rel (%p503) target = $region48
        $region47: #{tpu_custom_call.1} parent=43 // pred_region
          %s506 = sand.u32 %s97, 1
          %s507 = scalar_lea.sflag [#allocation4], %s506
          %s508 = sand.u32 %s97, 1
          %s509 = smul.addr %s508, 32
          %s510 = scalar_lea.vmem [#allocation7], %s509
          %511 = dma.done %s507, 512
        $region48: #{tpu_custom_call.1} parent=43 // pred_fallthru
          _
      $region44: #{tpu_custom_call.1} parent=5 // pred_fallthru
        _
    $region6: #{tpu_custom_call.1} parent=1 // loop_footer
      %s21 = sadd.s32 1, %s17
    $region7: #{tpu_custom_call.1} parent=1 // loop_footer_branch
      %16 = sbr.rel target = $region3
    $region8: #{tpu_custom_call.1} parent=1 // loop_exit
      _
    %512 = vsyncpa [#allocation3], 1
    %s513 = scalar_lea.sflag [#allocation3], 1
    %514 = vsyncpa %s513, 1
    %515 = vsyncpa [#allocation6], 1
    %s516 = scalar_lea.sflag [#allocation6], 1
    %517 = vsyncpa %s516, 1
    %518 = vsyncpa [#allocation4], 1
    %s519 = scalar_lea.sflag [#allocation4], 1
    %520 = vsyncpa %s519, 1

</llo_original>
